<compile_context>
chip_gen: v7x
topology: tpu7x:2x2x1
jax: 0.10.0
libtpu: 0.0.40
codegen_flags: <defaults>
</compile_context>

<pallas_src>
import functools

import jax
import jax.numpy as jnp
from jax import lax
from jax.experimental import pallas as pl
from jax.experimental.pallas import tpu as pltpu


def _round_up(x, m):
    return ((x + m - 1) // m) * m


def _embed_classifier_kernel(ids_ref, embT_ref, w1_ref, b1_ref, w2_ref, b2_ref,
                             out_ref, *, seq_len):
    """One batch tile, fully in VMEM.

    ids_ref : (S, TB)        int32  token ids, batch on the lane axis
    embT_ref: (E_pad, V_pad) f32    transposed, zero-padded embedding table
    w1_ref  : (H_pad, E_pad) f32    fc1 weight, PyTorch (out, in) layout
    b1_ref  : (H_pad, 1)     f32
    w2_ref  : (C_pad, H_pad) f32    fc2 weight
    b2_ref  : (C_pad, 1)     f32
    out_ref : (C_pad, TB)    f32    transposed logits tile
    """
    v_pad = embT_ref.shape[1]
    tb = out_ref.shape[1]

    # Vocab iota along sublanes, batch along lanes. Hoisted out of the loop.
    v_iota = lax.broadcasted_iota(jnp.int32, (v_pad, tb), 0)

    # countsT[v, b] = #occurrences of token v in sequence b.
    # Streaming per-position accumulation: one (1, TB) load + one (V_pad, TB)
    # compare/add per position; no 3-D one-hot temporary is ever materialized.
    def body(s, counts):
        tok = ids_ref[pl.ds(s, 1), :]                             # (1, TB) int32
        return counts + (tok == v_iota).astype(jnp.float32)       # (V_pad, TB)

    counts = lax.fori_loop(0, seq_len, body,
                           jnp.zeros((v_pad, tb), jnp.float32),
                           unroll=min(8, seq_len))

    # Mean-pool over the sequence == (counts / S) @ table, done on the MXU.
    inv_s = jnp.float32(1.0 / seq_len)
    pooled_t = jnp.dot(embT_ref[...], counts * inv_s,
                       preferred_element_type=jnp.float32)        # (E_pad, TB)

    # fc1 + ReLU
    hidden_t = jnp.dot(w1_ref[...], pooled_t,
                       preferred_element_type=jnp.float32) + b1_ref[...]
    hidden_t = jnp.maximum(hidden_t, 0.0)                         # (H_pad, TB)

    # fc2
    out_t = jnp.dot(w2_ref[...], hidden_t,
                    preferred_element_type=jnp.float32) + b2_ref[...]
    out_ref[...] = out_t.astype(out_ref.dtype)                    # (C_pad, TB)


def embed_classifier_forward(token_ids, emb_table, w1, b1, w2, b2):
    """token_ids: (B, S) int. Weights in PyTorch layout:
    emb_table (V, E), w1 (H, E), b1 (H,), w2 (C, H), b2 (C,).
    Returns (B, C) float32 logits."""
    B, S = token_ids.shape
    V, E = emb_table.shape
    H = w1.shape[0]
    C = w2.shape[0]

    # Lane-dense padding of the feature / contraction dims (exact-zero padding).
    v_pad = _round_up(V, 128)
    e_pad = _round_up(E, 128)
    h_pad = _round_up(H, 128)
    c_pad = _round_up(C, 8)

    # Batch lives on the lane axis of every tensor, so a batch tile is either
    # the full (un-padded) batch or a multiple of 128.
    if B <= 128:
        tb, b_pad = B, B                          # single tile, no padding
    else:
        tb = 128
        b_pad = _round_up(B, 128)
    num_tiles = b_pad // tb
    # TODO(synk): for 8 < B <= 128 on v7x only one grid step exists, so the
    # second TensorCore idles; pad the batch to 2 tiles there if it matters.

    # VMEM-resident path only: table + weights stay in VMEM for the whole call.
    resident = 4 * (e_pad * v_pad + h_pad * e_pad + c_pad * h_pad + h_pad + c_pad)
    streamed = 4 * (2 * S * tb + 2 * c_pad * tb)   # double-buffered ids + out blocks
    if resident > 20 * 2**20:
        # TODO(synk): large-vocab fallback (HBM-resident table + wave-limited
        # row-DMA gather) not implemented; this kernel targets small/medium V.
        raise NotImplementedError("embedding table + weights exceed VMEM budget")

    # Transposed, zero-padded operands (all padding contributes exact zeros).
    ids_t = token_ids.astype(jnp.int32).T                               # (S, B)
    if b_pad != B:
        ids_t = jnp.pad(ids_t, ((0, 0), (0, b_pad - B)))
    emb_t = jnp.pad(emb_table.astype(jnp.float32).T,
                    ((0, e_pad - E), (0, v_pad - V)))                   # (E_pad, V_pad)
    w1_p = jnp.pad(w1.astype(jnp.float32), ((0, h_pad - H), (0, e_pad - E)))
    b1_p = jnp.pad(b1.astype(jnp.float32), (0, h_pad - H)).reshape(h_pad, 1)
    w2_p = jnp.pad(w2.astype(jnp.float32), ((0, c_pad - C), (0, h_pad - H)))
    b2_p = jnp.pad(b2.astype(jnp.float32), (0, c_pad - C)).reshape(c_pad, 1)

    kernel = functools.partial(_embed_classifier_kernel, seq_len=S)

    vmem_budget = int(min(48 * 2**20,
                          max(16 * 2**20, 2 * (resident + streamed) + (4 << 20))))

    cost = pl.CostEstimate(
        flops=int(2 * b_pad * (v_pad * e_pad + e_pad * h_pad + h_pad * c_pad)),
        transcendentals=0,
        bytes_accessed=int(ids_t.size * 4 + emb_t.size * 4 + w1_p.size * 4
                           + w2_p.size * 4 + b1_p.size * 4 + b2_p.size * 4
                           + b_pad * c_pad * 4),
    )

    vmem = pltpu.MemorySpace.VMEM
    out_t = pl.pallas_call(
        kernel,
        out_shape=jax.ShapeDtypeStruct((c_pad, b_pad), jnp.float32),
        grid=(num_tiles,),
        in_specs=[
            pl.BlockSpec((S, tb), lambda i: (0, i)),   # ids: per-batch-tile block
            pl.BlockSpec(memory_space=vmem),           # emb table: resident, 1 copy
            pl.BlockSpec(memory_space=vmem),           # w1
            pl.BlockSpec(memory_space=vmem),           # b1
            pl.BlockSpec(memory_space=vmem),           # w2
            pl.BlockSpec(memory_space=vmem),           # b2
        ],
        out_specs=pl.BlockSpec((c_pad, tb), lambda i: (0, i)),
        compiler_params=pltpu.CompilerParams(
            dimension_semantics=("parallel",),
            vmem_limit_bytes=vmem_budget,
        ),
        cost_estimate=cost,
    )(ids_t, emb_t, w1_p, b1_p, w2_p, b2_p)

    return out_t[:C, :B].T


def init_params(key, vocab_size, embed_dim, hidden_dim, num_class):
    """PyTorch-default-like init; weights in nn.Linear (out, in) layout."""
    k_emb, k_w1, k_b1, k_w2, k_b2 = jax.random.split(key, 5)
    emb = jax.random.normal(k_emb, (vocab_size, embed_dim), jnp.float32)
    bound1 = 1.0 / jnp.sqrt(embed_dim)
    w1 = jax.random.uniform(k_w1, (hidden_dim, embed_dim), jnp.float32, -bound1, bound1)
    b1 = jax.random.uniform(k_b1, (hidden_dim,), jnp.float32, -bound1, bound1)
    bound2 = 1.0 / jnp.sqrt(hidden_dim)
    w2 = jax.random.uniform(k_w2, (num_class, hidden_dim), jnp.float32, -bound2, bound2)
    b2 = jax.random.uniform(k_b2, (num_class,), jnp.float32, -bound2, bound2)
    return emb, w1, b1, w2, b2


def _reference(token_ids, emb_table, w1, b1, w2, b2):
    embedded = jnp.take(emb_table, token_ids, axis=0)        # (B, S, E)
    pooled = jnp.mean(embedded, axis=1)                      # (B, E)
    hidden = jnp.maximum(pooled @ w1.T + b1, 0.0)
    return hidden @ w2.T + b2


if __name__ == "__main__":
    key = jax.random.PRNGKey(0)
    k_params, k_tok, k_params2, k_tok2 = jax.random.split(key, 4)

    # Small shapes consistent with the module's forward.
    vocab, embed, hidden, num_class = 50, 32, 32, 4
    batch, seq = 2, 8
    params = init_params(k_params, vocab, embed, hidden, num_class)
    tok = jax.random.randint(k_tok, (batch, seq), 0, vocab, dtype=jnp.int32)

    logits = jax.block_until_ready(embed_classifier_forward(tok, *params))
    ref = _reference(tok, *params)
    assert logits.shape == (batch, num_class)
    assert jnp.allclose(logits, ref, atol=1e-5, rtol=1e-5), (
        float(jnp.max(jnp.abs(logits - ref))))

    # Second check: exercises padding + multi-tile (B > 128 -> 2 parallel tiles).
    vocab2, embed2, hidden2, classes2 = 300, 48, 64, 7
    batch2, seq2 = 160, 12
    params2 = init_params(k_params2, vocab2, embed2, hidden2, classes2)
    tok2 = jax.random.randint(k_tok2, (batch2, seq2), 0, vocab2, dtype=jnp.int32)

    logits2 = jax.block_until_ready(embed_classifier_forward(tok2, *params2))
    ref2 = _reference(tok2, *params2)
    assert logits2.shape == (batch2, classes2)
    assert jnp.allclose(logits2, ref2, atol=1e-5, rtol=1e-5), (
        float(jnp.max(jnp.abs(logits2 - ref2))))

    print("KERNEL_OK")
</pallas_src>

<mosaic_0001>
module attributes {stable_mosaic.version = 11 : i64} {
  func.func @_embed_classifier_kernel(%arg0: i32, %arg1: memref<8x2xi32, #tpu.memory_space<vmem>>, %arg2: memref<128x128xf32, #tpu.memory_space<vmem>>, %arg3: memref<128x128xf32, #tpu.memory_space<vmem>>, %arg4: memref<128x1xf32, #tpu.memory_space<vmem>>, %arg5: memref<8x128xf32, #tpu.memory_space<vmem>>, %arg6: memref<8x1xf32, #tpu.memory_space<vmem>>, %arg7: memref<8x2xf32, #tpu.memory_space<vmem>>) attributes {dimension_semantics = [#tpu.dimension_semantics<parallel>], iteration_bounds = array<i64: 1>, scalar_prefetch = 0 : i64, scratch_operands = 0 : i64, tpu.core_type = #tpu.core_type<tc>, window_params = [{transform_indices = @transform_0, window_bounds = array<i64: 8, 2>}, {pipeline_mode = #tpu.pipeline_mode<synchronous>, transform_indices = @transform_1, window_bounds = array<i64: 128, 128>}, {pipeline_mode = #tpu.pipeline_mode<synchronous>, transform_indices = @transform_2, window_bounds = array<i64: 128, 128>}, {pipeline_mode = #tpu.pipeline_mode<synchronous>, transform_indices = @transform_3, window_bounds = array<i64: 128, 1>}, {pipeline_mode = #tpu.pipeline_mode<synchronous>, transform_indices = @transform_4, window_bounds = array<i64: 8, 128>}, {pipeline_mode = #tpu.pipeline_mode<synchronous>, transform_indices = @transform_5, window_bounds = array<i64: 8, 1>}, {transform_indices = @transform_6, window_bounds = array<i64: 8, 2>}]} {
    %0 = tpu.iota {dimensions = array<i32: 0>} : vector<128x2xi32>
    %cst = arith.constant 0.000000e+00 : f32
    %1 = vector.broadcast %cst : f32 to vector<128x2xf32>
    %c0_i32 = arith.constant 0 : i32
    %2 = arith.index_cast %c0_i32 : i32 to index
    %c0 = arith.constant 0 : index
    %3 = vector.load %arg1[%2, %c0] : memref<8x2xi32, #tpu.memory_space<vmem>>, vector<1x2xi32>
    %4 = vector.broadcast %3 : vector<1x2xi32> to vector<128x2xi32>
    %5 = arith.cmpi eq, %4, %0 : vector<128x2xi32>
    %6 = arith.extui %5 : vector<128x2xi1> to vector<128x2xi32>
    %7 = arith.sitofp %6 : vector<128x2xi32> to vector<128x2xf32>
    %8 = arith.addf %1, %7 : vector<128x2xf32>
    %c1_i32 = arith.constant 1 : i32
    %9 = arith.index_cast %c1_i32 : i32 to index
    %c0_0 = arith.constant 0 : index
    %10 = vector.load %arg1[%9, %c0_0] : memref<8x2xi32, #tpu.memory_space<vmem>>, vector<1x2xi32>
    %11 = vector.broadcast %10 : vector<1x2xi32> to vector<128x2xi32>
    %12 = arith.cmpi eq, %11, %0 : vector<128x2xi32>
    %13 = arith.extui %12 : vector<128x2xi1> to vector<128x2xi32>
    %14 = arith.sitofp %13 : vector<128x2xi32> to vector<128x2xf32>
    %15 = arith.addf %8, %14 : vector<128x2xf32>
    %c2_i32 = arith.constant 2 : i32
    %16 = arith.index_cast %c2_i32 : i32 to index
    %c0_1 = arith.constant 0 : index
    %17 = vector.load %arg1[%16, %c0_1] : memref<8x2xi32, #tpu.memory_space<vmem>>, vector<1x2xi32>
    %18 = vector.broadcast %17 : vector<1x2xi32> to vector<128x2xi32>
    %19 = arith.cmpi eq, %18, %0 : vector<128x2xi32>
    %20 = arith.extui %19 : vector<128x2xi1> to vector<128x2xi32>
    %21 = arith.sitofp %20 : vector<128x2xi32> to vector<128x2xf32>
    %22 = arith.addf %15, %21 : vector<128x2xf32>
    %c3_i32 = arith.constant 3 : i32
    %23 = arith.index_cast %c3_i32 : i32 to index
    %c0_2 = arith.constant 0 : index
    %24 = vector.load %arg1[%23, %c0_2] : memref<8x2xi32, #tpu.memory_space<vmem>>, vector<1x2xi32>
    %25 = vector.broadcast %24 : vector<1x2xi32> to vector<128x2xi32>
    %26 = arith.cmpi eq, %25, %0 : vector<128x2xi32>
    %27 = arith.extui %26 : vector<128x2xi1> to vector<128x2xi32>
    %28 = arith.sitofp %27 : vector<128x2xi32> to vector<128x2xf32>
    %29 = arith.addf %22, %28 : vector<128x2xf32>
    %c4_i32 = arith.constant 4 : i32
    %30 = arith.index_cast %c4_i32 : i32 to index
    %c0_3 = arith.constant 0 : index
    %31 = vector.load %arg1[%30, %c0_3] : memref<8x2xi32, #tpu.memory_space<vmem>>, vector<1x2xi32>
    %32 = vector.broadcast %31 : vector<1x2xi32> to vector<128x2xi32>
    %33 = arith.cmpi eq, %32, %0 : vector<128x2xi32>
    %34 = arith.extui %33 : vector<128x2xi1> to vector<128x2xi32>
    %35 = arith.sitofp %34 : vector<128x2xi32> to vector<128x2xf32>
    %36 = arith.addf %29, %35 : vector<128x2xf32>
    %c5_i32 = arith.constant 5 : i32
    %37 = arith.index_cast %c5_i32 : i32 to index
    %c0_4 = arith.constant 0 : index
    %38 = vector.load %arg1[%37, %c0_4] : memref<8x2xi32, #tpu.memory_space<vmem>>, vector<1x2xi32>
    %39 = vector.broadcast %38 : vector<1x2xi32> to vector<128x2xi32>
    %40 = arith.cmpi eq, %39, %0 : vector<128x2xi32>
    %41 = arith.extui %40 : vector<128x2xi1> to vector<128x2xi32>
    %42 = arith.sitofp %41 : vector<128x2xi32> to vector<128x2xf32>
    %43 = arith.addf %36, %42 : vector<128x2xf32>
    %c6_i32 = arith.constant 6 : i32
    %44 = arith.index_cast %c6_i32 : i32 to index
    %c0_5 = arith.constant 0 : index
    %45 = vector.load %arg1[%44, %c0_5] : memref<8x2xi32, #tpu.memory_space<vmem>>, vector<1x2xi32>
    %46 = vector.broadcast %45 : vector<1x2xi32> to vector<128x2xi32>
    %47 = arith.cmpi eq, %46, %0 : vector<128x2xi32>
    %48 = arith.extui %47 : vector<128x2xi1> to vector<128x2xi32>
    %49 = arith.sitofp %48 : vector<128x2xi32> to vector<128x2xf32>
    %50 = arith.addf %43, %49 : vector<128x2xf32>
    %c7_i32 = arith.constant 7 : i32
    %51 = arith.index_cast %c7_i32 : i32 to index
    %c0_6 = arith.constant 0 : index
    %52 = vector.load %arg1[%51, %c0_6] : memref<8x2xi32, #tpu.memory_space<vmem>>, vector<1x2xi32>
    %53 = vector.broadcast %52 : vector<1x2xi32> to vector<128x2xi32>
    %54 = arith.cmpi eq, %53, %0 : vector<128x2xi32>
    %55 = arith.extui %54 : vector<128x2xi1> to vector<128x2xi32>
    %56 = arith.sitofp %55 : vector<128x2xi32> to vector<128x2xf32>
    %57 = arith.addf %50, %56 : vector<128x2xf32>
    %c8_i32 = arith.constant 8 : i32
    %c0_7 = arith.constant 0 : index
    %c0_8 = arith.constant 0 : index
    %58 = vector.load %arg2[%c0_7, %c0_8] : memref<128x128xf32, #tpu.memory_space<vmem>>, vector<128x128xf32>
    %cst_9 = arith.constant 1.250000e-01 : f32
    %59 = vector.broadcast %cst_9 : f32 to vector<128x2xf32>
    %60 = arith.mulf %57, %59 : vector<128x2xf32>
    %cst_10 = arith.constant dense<0.000000e+00> : vector<128x2xf32>
    %61 = tpu.matmul %58, %60, %cst_10 {dimension_numbers = #tpu.dot_dimension_numbers<[1], [0], [0], [1], [0, 0, 1, 1], [], []>} : vector<128x128xf32>, vector<128x2xf32>, vector<128x2xf32> -> vector<128x2xf32>
    %c0_11 = arith.constant 0 : index
    %c0_12 = arith.constant 0 : index
    %62 = vector.load %arg3[%c0_11, %c0_12] : memref<128x128xf32, #tpu.memory_space<vmem>>, vector<128x128xf32>
    %cst_13 = arith.constant dense<0.000000e+00> : vector<128x2xf32>
    %63 = tpu.matmul %62, %61, %cst_13 {dimension_numbers = #tpu.dot_dimension_numbers<[1], [0], [0], [1], [0, 0, 1, 1], [], []>} : vector<128x128xf32>, vector<128x2xf32>, vector<128x2xf32> -> vector<128x2xf32>
    %c0_14 = arith.constant 0 : index
    %c0_15 = arith.constant 0 : index
    %64 = vector.load %arg4[%c0_14, %c0_15] : memref<128x1xf32, #tpu.memory_space<vmem>>, vector<128x1xf32>
    %65 = vector.broadcast %64 : vector<128x1xf32> to vector<128x2xf32>
    %66 = arith.addf %63, %65 : vector<128x2xf32>
    %cst_16 = arith.constant 0.000000e+00 : f32
    %67 = vector.broadcast %cst_16 : f32 to vector<128x2xf32>
    %68 = arith.maximumf %66, %67 : vector<128x2xf32>
    %c0_17 = arith.constant 0 : index
    %c0_18 = arith.constant 0 : index
    %69 = vector.load %arg5[%c0_17, %c0_18] : memref<8x128xf32, #tpu.memory_space<vmem>>, vector<8x128xf32>
    %cst_19 = arith.constant dense<0.000000e+00> : vector<8x2xf32>
    %70 = tpu.matmul %69, %68, %cst_19 {dimension_numbers = #tpu.dot_dimension_numbers<[1], [0], [0], [1], [0, 0, 1, 1], [], []>} : vector<8x128xf32>, vector<128x2xf32>, vector<8x2xf32> -> vector<8x2xf32>
    %c0_20 = arith.constant 0 : index
    %c0_21 = arith.constant 0 : index
    %71 = vector.load %arg6[%c0_20, %c0_21] : memref<8x1xf32, #tpu.memory_space<vmem>>, vector<8x1xf32>
    %72 = vector.broadcast %71 : vector<8x1xf32> to vector<8x2xf32>
    %73 = arith.addf %70, %72 : vector<8x2xf32>
    %c0_22 = arith.constant 0 : index
    %c0_23 = arith.constant 0 : index
    %74 = vector.load %arg7[%c0_22, %c0_23] : memref<8x2xf32, #tpu.memory_space<vmem>>, vector<8x2xf32>
    tpu.vector_store %arg7[%c0_22, %c0_23], %73 {strides = array<i32>} : memref<8x2xf32, #tpu.memory_space<vmem>>, vector<8x2xf32>,
    return
  }
  func.func @transform_0(%arg0: i32) -> (i32, i32) {
    %c0_i32 = arith.constant 0 : i32
    %c0_i32_0 = arith.constant 0 : i32
    return %c0_i32, %arg0 : i32, i32
  }
  func.func @transform_1(%arg0: i32) -> (i32, i32) {
    %c0_i32 = arith.constant 0 : i32
    %c0_i32_0 = arith.constant 0 : i32
    %c0_i32_1 = arith.constant 0 : i32
    return %c0_i32, %c0_i32_0 : i32, i32
  }
  func.func @transform_2(%arg0: i32) -> (i32, i32) {
    %c0_i32 = arith.constant 0 : i32
    %c0_i32_0 = arith.constant 0 : i32
    %c0_i32_1 = arith.constant 0 : i32
    return %c0_i32, %c0_i32_0 : i32, i32
  }
  func.func @transform_3(%arg0: i32) -> (i32, i32) {
    %c0_i32 = arith.constant 0 : i32
    %c0_i32_0 = arith.constant 0 : i32
    %c0_i32_1 = arith.constant 0 : i32
    return %c0_i32, %c0_i32_0 : i32, i32
  }
  func.func @transform_4(%arg0: i32) -> (i32, i32) {
    %c0_i32 = arith.constant 0 : i32
    %c0_i32_0 = arith.constant 0 : i32
    %c0_i32_1 = arith.constant 0 : i32
    return %c0_i32, %c0_i32_0 : i32, i32
  }
  func.func @transform_5(%arg0: i32) -> (i32, i32) {
    %c0_i32 = arith.constant 0 : i32
    %c0_i32_0 = arith.constant 0 : i32
    %c0_i32_1 = arith.constant 0 : i32
    return %c0_i32, %c0_i32_0 : i32, i32
  }
  func.func @transform_6(%arg0: i32) -> (i32, i32) {
    %c0_i32 = arith.constant 0 : i32
    %c0_i32_0 = arith.constant 0 : i32
    return %c0_i32, %arg0 : i32, i32
  }
}

</mosaic_0001>

<llo_original>
// kernel: tpu_custom_call.1
$region0: #{tpu_custom_call.1}
  #allocation0 [shape = 'u32[]', space=smem, size = 0x4, offset = 0x4, fixed_abs, tag = 'smem constant byte address 0x4 - core index']
  #allocation1 [shape = 'u32[144,128]{1,0:T(1,128)}', space=vmem, size = 0x12000, scoped, tag = 'internal scratch']
  %s0 = inlined_call_operand.vmem [shape: s32[8,2], index: 0, kind: input, shape index: {}]
  %s1 = inlined_call_operand.vmem [shape: f32[128,128], index: 1, kind: input, shape index: {}]
  %s2 = inlined_call_operand.hbm [shape: f32[128,128], index: 2, kind: input, shape index: {}]
  %s3 = inlined_call_operand.vmem [shape: f32[128,1], index: 3, kind: input, shape index: {}]
  %s4 = inlined_call_operand.vmem [shape: f32[8,128], index: 4, kind: input, shape index: {}]
  %s5 = inlined_call_operand.vmem [shape: f32[8,1], index: 5, kind: input, shape index: {}]
  %s6 = inlined_call_operand.vmem [shape: f32[8,2], index: 6, kind: output, shape index: {}]
  %s7 = sld [smem:[#allocation0]]
  $region38: #{tpu_custom_call.1} parent=0
    _
  %s9 = ssub.s32 1, %s7
  %s10 = scalar_select 0, %s9, %s7
  $region1: #{tpu_custom_call.1} parent=0
    #allocation2 [shape = 'u8[65536]{0}', space=vmem, size = 0x10000, scoped, tag = 'input window, operand 2, single buffered']
    #allocation3 [shape = 's32[1]{0}', space=sflag, size = 0x4, scoped, tag = 'scoped memory for tpu_custom_call.1']
    %11 = vsyncpa [#allocation3], 0
    // Predicated region
    $region2: #{tpu_custom_call.1} parent=1 // pred_check
      _
    $region3: #{tpu_custom_call.1} parent=1 // pred_check_branch
      %13 = sbr.rel (0) target = $region5
    $region4: #{tpu_custom_call.1} parent=1 // pred_region
      _
    $region5: #{tpu_custom_call.1} parent=1 // pred_fallthru
      _
    // Predicated region
    $region6: #{tpu_custom_call.1} parent=1 // pred_check
      _
    $region7: #{tpu_custom_call.1} parent=1 // pred_check_branch
      %15 = sbr.rel (0) target = $region9
    $region8: #{tpu_custom_call.1} parent=1 // pred_region
      _
    $region9: #{tpu_custom_call.1} parent=1 // pred_fallthru
      _
    // Predicated region
    $region10: #{tpu_custom_call.1} parent=1 // pred_check
      _
    $region11: #{tpu_custom_call.1} parent=1 // pred_check_branch
      %17 = sbr.rel (0) target = $region13
    $region12: #{tpu_custom_call.1} parent=1 // pred_region
      %s19 = ssub.s32 2048, 2048
      %20 = vsyncadd [#allocation3], %s19
      %s21 = sshll.u32 [#allocation2], 4
      %s22 = int_to_ptr.vmem [resolvable:$true] %s21
      %27 = dma.hbm_to_vmem [thread:$0]  %s2, 2048, %s22, [#allocation3], 128, 128, 8
    $region13: #{tpu_custom_call.1} parent=1 // pred_fallthru
      _
    // Predicated region
    $region14: #{tpu_custom_call.1} parent=1 // pred_check
      _
    $region15: #{tpu_custom_call.1} parent=1 // pred_check_branch
      %29 = sbr.rel (0) target = $region17
    $region16: #{tpu_custom_call.1} parent=1 // pred_region
      _
    $region17: #{tpu_custom_call.1} parent=1 // pred_fallthru
      _
    // Predicated region
    $region18: #{tpu_custom_call.1} parent=1 // pred_check
      _
    $region19: #{tpu_custom_call.1} parent=1 // pred_check_branch
      %31 = sbr.rel (0) target = $region21
    $region20: #{tpu_custom_call.1} parent=1 // pred_region
      _
    $region21: #{tpu_custom_call.1} parent=1 // pred_fallthru
      _
    // Predicated region
    $region22: #{tpu_custom_call.1} parent=1 // pred_check
      _
    $region23: #{tpu_custom_call.1} parent=1 // pred_check_branch
      %33 = sbr.rel (0) target = $region25
    $region24: #{tpu_custom_call.1} parent=1 // pred_region
      _
    $region25: #{tpu_custom_call.1} parent=1 // pred_fallthru
      _
    // Predicated region
    $region26: #{tpu_custom_call.1} parent=1 // pred_check
      _
    $region27: #{tpu_custom_call.1} parent=1 // pred_check_branch
      %35 = sbr.rel (0) target = $region29
    $region28: #{tpu_custom_call.1} parent=1 // pred_region
      %36 = dma.done [#allocation3], 2048
    $region29: #{tpu_custom_call.1} parent=1 // pred_fallthru
      _
    %v37 = vlaneseq
    %v38 = vshrl.u32 %v37, 7
    %v39 = vadd.s32 %v38, 8
    %v40 = vadd.s32 %v38, 16
    %v41 = vadd.s32 %v38, 24
    %v42 = vadd.s32 %v38, 32
    %v43 = vadd.s32 %v38, 40
    %v44 = vadd.s32 %v38, 48
    %v45 = vadd.s32 %v38, 56
    %v46 = vadd.s32 %v38, 64
    %v47 = vadd.s32 %v38, 72
    %v48 = vadd.s32 %v38, 80
    %v49 = vadd.s32 %v38, 88
    %v50 = vadd.s32 %v38, 96
    %v51 = vadd.s32 %v38, 104
    %v52 = vadd.s32 %v38, 112
    %v53 = vadd.s32 %v38, 120
    %v54 = vld [vmem:[%s0] sm:$0x1]
    %v55 = vlaneseq
    %v56 = vshrl.u32 %v55, 7
    %v57 = vsub.s32 0, %v56
    %v58 = vrot.slane %v54, %v57
    %vm59 = vcmp.eq.s32.totalorder %v58, %v38
    %vm60 = vcmp.eq.s32.totalorder %v58, %v39
    %vm61 = vcmp.eq.s32.totalorder %v58, %v40
    %vm62 = vcmp.eq.s32.totalorder %v58, %v41
    %vm63 = vcmp.eq.s32.totalorder %v58, %v42
    %vm64 = vcmp.eq.s32.totalorder %v58, %v43
    %vm65 = vcmp.eq.s32.totalorder %v58, %v44
    %vm66 = vcmp.eq.s32.totalorder %v58, %v45
    %vm67 = vcmp.eq.s32.totalorder %v58, %v46
    %vm68 = vcmp.eq.s32.totalorder %v58, %v47
    %vm69 = vcmp.eq.s32.totalorder %v58, %v48
    %vm70 = vcmp.eq.s32.totalorder %v58, %v49
    %vm71 = vcmp.eq.s32.totalorder %v58, %v50
    %vm72 = vcmp.eq.s32.totalorder %v58, %v51
    %vm73 = vcmp.eq.s32.totalorder %v58, %v52
    %vm74 = vcmp.eq.s32.totalorder %v58, %v53
    %v75 = vsel %vm59, 1, 0
    %v76 = vsel %vm60, 1, 0
    %v77 = vsel %vm61, 1, 0
    %v78 = vsel %vm62, 1, 0
    %v79 = vsel %vm63, 1, 0
    %v80 = vsel %vm64, 1, 0
    %v81 = vsel %vm65, 1, 0
    %v82 = vsel %vm66, 1, 0
    %v83 = vsel %vm67, 1, 0
    %v84 = vsel %vm68, 1, 0
    %v85 = vsel %vm69, 1, 0
    %v86 = vsel %vm70, 1, 0
    %v87 = vsel %vm71, 1, 0
    %v88 = vsel %vm72, 1, 0
    %v89 = vsel %vm73, 1, 0
    %v90 = vsel %vm74, 1, 0
    %v91 = vcvt.s32.f32 %v75
    %v92 = vcvt.s32.f32 %v76
    %v93 = vcvt.s32.f32 %v77
    %v94 = vcvt.s32.f32 %v78
    %v95 = vcvt.s32.f32 %v79
    %v96 = vcvt.s32.f32 %v80
    %v97 = vcvt.s32.f32 %v81
    %v98 = vcvt.s32.f32 %v82
    %v99 = vcvt.s32.f32 %v83
    %v100 = vcvt.s32.f32 %v84
    %v101 = vcvt.s32.f32 %v85
    %v102 = vcvt.s32.f32 %v86
    %v103 = vcvt.s32.f32 %v87
    %v104 = vcvt.s32.f32 %v88
    %v105 = vcvt.s32.f32 %v89
    %v106 = vcvt.s32.f32 %v90
    %v107 = vadd.f32 %v91, 0.0
    %v108 = vadd.f32 %v92, 0.0
    %v109 = vadd.f32 %v93, 0.0
    %v110 = vadd.f32 %v94, 0.0
    %v111 = vadd.f32 %v95, 0.0
    %v112 = vadd.f32 %v96, 0.0
    %v113 = vadd.f32 %v97, 0.0
    %v114 = vadd.f32 %v98, 0.0
    %v115 = vadd.f32 %v99, 0.0
    %v116 = vadd.f32 %v100, 0.0
    %v117 = vadd.f32 %v101, 0.0
    %v118 = vadd.f32 %v102, 0.0
    %v119 = vadd.f32 %v103, 0.0
    %v120 = vadd.f32 %v104, 0.0
    %v121 = vadd.f32 %v105, 0.0
    %v122 = vadd.f32 %v106, 0.0
    %v123 = vld [vmem:[%s0 + $0x1] sm:$0x1]
    %v124 = vlaneseq
    %v125 = vshrl.u32 %v124, 7
    %v126 = vsub.s32 0, %v125
    %v127 = vrot.slane %v123, %v126
    %vm128 = vcmp.eq.s32.totalorder %v127, %v38
    %vm129 = vcmp.eq.s32.totalorder %v127, %v39
    %vm130 = vcmp.eq.s32.totalorder %v127, %v40
    %vm131 = vcmp.eq.s32.totalorder %v127, %v41
    %vm132 = vcmp.eq.s32.totalorder %v127, %v42
    %vm133 = vcmp.eq.s32.totalorder %v127, %v43
    %vm134 = vcmp.eq.s32.totalorder %v127, %v44
    %vm135 = vcmp.eq.s32.totalorder %v127, %v45
    %vm136 = vcmp.eq.s32.totalorder %v127, %v46
    %vm137 = vcmp.eq.s32.totalorder %v127, %v47
    %vm138 = vcmp.eq.s32.totalorder %v127, %v48
    %vm139 = vcmp.eq.s32.totalorder %v127, %v49
    %vm140 = vcmp.eq.s32.totalorder %v127, %v50
    %vm141 = vcmp.eq.s32.totalorder %v127, %v51
    %vm142 = vcmp.eq.s32.totalorder %v127, %v52
    %vm143 = vcmp.eq.s32.totalorder %v127, %v53
    %v144 = vsel %vm128, 1, 0
    %v145 = vsel %vm129, 1, 0
    %v146 = vsel %vm130, 1, 0
    %v147 = vsel %vm131, 1, 0
    %v148 = vsel %vm132, 1, 0
    %v149 = vsel %vm133, 1, 0
    %v150 = vsel %vm134, 1, 0
    %v151 = vsel %vm135, 1, 0
    %v152 = vsel %vm136, 1, 0
    %v153 = vsel %vm137, 1, 0
    %v154 = vsel %vm138, 1, 0
    %v155 = vsel %vm139, 1, 0
    %v156 = vsel %vm140, 1, 0
    %v157 = vsel %vm141, 1, 0
    %v158 = vsel %vm142, 1, 0
    %v159 = vsel %vm143, 1, 0
    %v160 = vcvt.s32.f32 %v144
    %v161 = vcvt.s32.f32 %v145
    %v162 = vcvt.s32.f32 %v146
    %v163 = vcvt.s32.f32 %v147
    %v164 = vcvt.s32.f32 %v148
    %v165 = vcvt.s32.f32 %v149
    %v166 = vcvt.s32.f32 %v150
    %v167 = vcvt.s32.f32 %v151
    %v168 = vcvt.s32.f32 %v152
    %v169 = vcvt.s32.f32 %v153
    %v170 = vcvt.s32.f32 %v154
    %v171 = vcvt.s32.f32 %v155
    %v172 = vcvt.s32.f32 %v156
    %v173 = vcvt.s32.f32 %v157
    %v174 = vcvt.s32.f32 %v158
    %v175 = vcvt.s32.f32 %v159
    %v176 = vadd.f32 %v107, %v160
    %v177 = vadd.f32 %v108, %v161
    %v178 = vadd.f32 %v109, %v162
    %v179 = vadd.f32 %v110, %v163
    %v180 = vadd.f32 %v111, %v164
    %v181 = vadd.f32 %v112, %v165
    %v182 = vadd.f32 %v113, %v166
    %v183 = vadd.f32 %v114, %v167
    %v184 = vadd.f32 %v115, %v168
    %v185 = vadd.f32 %v116, %v169
    %v186 = vadd.f32 %v117, %v170
    %v187 = vadd.f32 %v118, %v171
    %v188 = vadd.f32 %v119, %v172
    %v189 = vadd.f32 %v120, %v173
    %v190 = vadd.f32 %v121, %v174
    %v191 = vadd.f32 %v122, %v175
    %v192 = vld [vmem:[%s0 + $0x2] sm:$0x1]
    %v193 = vlaneseq
    %v194 = vshrl.u32 %v193, 7
    %v195 = vsub.s32 0, %v194
    %v196 = vrot.slane %v192, %v195
    %vm197 = vcmp.eq.s32.totalorder %v196, %v38
    %vm198 = vcmp.eq.s32.totalorder %v196, %v39
    %vm199 = vcmp.eq.s32.totalorder %v196, %v40
    %vm200 = vcmp.eq.s32.totalorder %v196, %v41
    %vm201 = vcmp.eq.s32.totalorder %v196, %v42
    %vm202 = vcmp.eq.s32.totalorder %v196, %v43
    %vm203 = vcmp.eq.s32.totalorder %v196, %v44
    %vm204 = vcmp.eq.s32.totalorder %v196, %v45
    %vm205 = vcmp.eq.s32.totalorder %v196, %v46
    %vm206 = vcmp.eq.s32.totalorder %v196, %v47
    %vm207 = vcmp.eq.s32.totalorder %v196, %v48
    %vm208 = vcmp.eq.s32.totalorder %v196, %v49
    %vm209 = vcmp.eq.s32.totalorder %v196, %v50
    %vm210 = vcmp.eq.s32.totalorder %v196, %v51
    %vm211 = vcmp.eq.s32.totalorder %v196, %v52
    %vm212 = vcmp.eq.s32.totalorder %v196, %v53
    %v213 = vsel %vm197, 1, 0
    %v214 = vsel %vm198, 1, 0
    %v215 = vsel %vm199, 1, 0
    %v216 = vsel %vm200, 1, 0
    %v217 = vsel %vm201, 1, 0
    %v218 = vsel %vm202, 1, 0
    %v219 = vsel %vm203, 1, 0
    %v220 = vsel %vm204, 1, 0
    %v221 = vsel %vm205, 1, 0
    %v222 = vsel %vm206, 1, 0
    %v223 = vsel %vm207, 1, 0
    %v224 = vsel %vm208, 1, 0
    %v225 = vsel %vm209, 1, 0
    %v226 = vsel %vm210, 1, 0
    %v227 = vsel %vm211, 1, 0
    %v228 = vsel %vm212, 1, 0
    %v229 = vcvt.s32.f32 %v213
    %v230 = vcvt.s32.f32 %v214
    %v231 = vcvt.s32.f32 %v215
    %v232 = vcvt.s32.f32 %v216
    %v233 = vcvt.s32.f32 %v217
    %v234 = vcvt.s32.f32 %v218
    %v235 = vcvt.s32.f32 %v219
    %v236 = vcvt.s32.f32 %v220
    %v237 = vcvt.s32.f32 %v221
    %v238 = vcvt.s32.f32 %v222
    %v239 = vcvt.s32.f32 %v223
    %v240 = vcvt.s32.f32 %v224
    %v241 = vcvt.s32.f32 %v225
    %v242 = vcvt.s32.f32 %v226
    %v243 = vcvt.s32.f32 %v227
    %v244 = vcvt.s32.f32 %v228
    %v245 = vadd.f32 %v176, %v229
    %v246 = vadd.f32 %v177, %v230
    %v247 = vadd.f32 %v178, %v231
    %v248 = vadd.f32 %v179, %v232
    %v249 = vadd.f32 %v180, %v233
    %v250 = vadd.f32 %v181, %v234
    %v251 = vadd.f32 %v182, %v235
    %v252 = vadd.f32 %v183, %v236
    %v253 = vadd.f32 %v184, %v237
    %v254 = vadd.f32 %v185, %v238
    %v255 = vadd.f32 %v186, %v239
    %v256 = vadd.f32 %v187, %v240
    %v257 = vadd.f32 %v188, %v241
    %v258 = vadd.f32 %v189, %v242
    %v259 = vadd.f32 %v190, %v243
    %v260 = vadd.f32 %v191, %v244
    %v261 = vld [vmem:[%s0 + $0x3] sm:$0x1]
    %v262 = vlaneseq
    %v263 = vshrl.u32 %v262, 7
    %v264 = vsub.s32 0, %v263
    %v265 = vrot.slane %v261, %v264
    %vm266 = vcmp.eq.s32.totalorder %v265, %v38
    %vm267 = vcmp.eq.s32.totalorder %v265, %v39
    %vm268 = vcmp.eq.s32.totalorder %v265, %v40
    %vm269 = vcmp.eq.s32.totalorder %v265, %v41
    %vm270 = vcmp.eq.s32.totalorder %v265, %v42
    %vm271 = vcmp.eq.s32.totalorder %v265, %v43
    %vm272 = vcmp.eq.s32.totalorder %v265, %v44
    %vm273 = vcmp.eq.s32.totalorder %v265, %v45
    %vm274 = vcmp.eq.s32.totalorder %v265, %v46
    %vm275 = vcmp.eq.s32.totalorder %v265, %v47
    %vm276 = vcmp.eq.s32.totalorder %v265, %v48
    %vm277 = vcmp.eq.s32.totalorder %v265, %v49
    %vm278 = vcmp.eq.s32.totalorder %v265, %v50
    %vm279 = vcmp.eq.s32.totalorder %v265, %v51
    %vm280 = vcmp.eq.s32.totalorder %v265, %v52
    %vm281 = vcmp.eq.s32.totalorder %v265, %v53
    %v282 = vsel %vm266, 1, 0
    %v283 = vsel %vm267, 1, 0
    %v284 = vsel %vm268, 1, 0
    %v285 = vsel %vm269, 1, 0
    %v286 = vsel %vm270, 1, 0
    %v287 = vsel %vm271, 1, 0
    %v288 = vsel %vm272, 1, 0
    %v289 = vsel %vm273, 1, 0
    %v290 = vsel %vm274, 1, 0
    %v291 = vsel %vm275, 1, 0
    %v292 = vsel %vm276, 1, 0
    %v293 = vsel %vm277, 1, 0
    %v294 = vsel %vm278, 1, 0
    %v295 = vsel %vm279, 1, 0
    %v296 = vsel %vm280, 1, 0
    %v297 = vsel %vm281, 1, 0
    %v298 = vcvt.s32.f32 %v282
    %v299 = vcvt.s32.f32 %v283
    %v300 = vcvt.s32.f32 %v284
    %v301 = vcvt.s32.f32 %v285
    %v302 = vcvt.s32.f32 %v286
    %v303 = vcvt.s32.f32 %v287
    %v304 = vcvt.s32.f32 %v288
    %v305 = vcvt.s32.f32 %v289
    %v306 = vcvt.s32.f32 %v290
    %v307 = vcvt.s32.f32 %v291
    %v308 = vcvt.s32.f32 %v292
    %v309 = vcvt.s32.f32 %v293
    %v310 = vcvt.s32.f32 %v294
    %v311 = vcvt.s32.f32 %v295
    %v312 = vcvt.s32.f32 %v296
    %v313 = vcvt.s32.f32 %v297
    %v314 = vadd.f32 %v245, %v298
    %v315 = vadd.f32 %v246, %v299
    %v316 = vadd.f32 %v247, %v300
    %v317 = vadd.f32 %v248, %v301
    %v318 = vadd.f32 %v249, %v302
    %v319 = vadd.f32 %v250, %v303
    %v320 = vadd.f32 %v251, %v304
    %v321 = vadd.f32 %v252, %v305
    %v322 = vadd.f32 %v253, %v306
    %v323 = vadd.f32 %v254, %v307
    %v324 = vadd.f32 %v255, %v308
    %v325 = vadd.f32 %v256, %v309
    %v326 = vadd.f32 %v257, %v310
    %v327 = vadd.f32 %v258, %v311
    %v328 = vadd.f32 %v259, %v312
    %v329 = vadd.f32 %v260, %v313
    %v330 = vld [vmem:[%s0 + $0x4] sm:$0x1]
    %v331 = vlaneseq
    %v332 = vshrl.u32 %v331, 7
    %v333 = vsub.s32 0, %v332
    %v334 = vrot.slane %v330, %v333
    %vm335 = vcmp.eq.s32.totalorder %v334, %v38
    %vm336 = vcmp.eq.s32.totalorder %v334, %v39
    %vm337 = vcmp.eq.s32.totalorder %v334, %v40
    %vm338 = vcmp.eq.s32.totalorder %v334, %v41
    %vm339 = vcmp.eq.s32.totalorder %v334, %v42
    %vm340 = vcmp.eq.s32.totalorder %v334, %v43
    %vm341 = vcmp.eq.s32.totalorder %v334, %v44
    %vm342 = vcmp.eq.s32.totalorder %v334, %v45
    %vm343 = vcmp.eq.s32.totalorder %v334, %v46
    %vm344 = vcmp.eq.s32.totalorder %v334, %v47
    %vm345 = vcmp.eq.s32.totalorder %v334, %v48
    %vm346 = vcmp.eq.s32.totalorder %v334, %v49
    %vm347 = vcmp.eq.s32.totalorder %v334, %v50
    %vm348 = vcmp.eq.s32.totalorder %v334, %v51
    %vm349 = vcmp.eq.s32.totalorder %v334, %v52
    %vm350 = vcmp.eq.s32.totalorder %v334, %v53
    %v351 = vsel %vm335, 1, 0
    %v352 = vsel %vm336, 1, 0
    %v353 = vsel %vm337, 1, 0
    %v354 = vsel %vm338, 1, 0
    %v355 = vsel %vm339, 1, 0
    %v356 = vsel %vm340, 1, 0
    %v357 = vsel %vm341, 1, 0
    %v358 = vsel %vm342, 1, 0
    %v359 = vsel %vm343, 1, 0
    %v360 = vsel %vm344, 1, 0
    %v361 = vsel %vm345, 1, 0
    %v362 = vsel %vm346, 1, 0
    %v363 = vsel %vm347, 1, 0
    %v364 = vsel %vm348, 1, 0
    %v365 = vsel %vm349, 1, 0
    %v366 = vsel %vm350, 1, 0
    %v367 = vcvt.s32.f32 %v351
    %v368 = vcvt.s32.f32 %v352
    %v369 = vcvt.s32.f32 %v353
    %v370 = vcvt.s32.f32 %v354
    %v371 = vcvt.s32.f32 %v355
    %v372 = vcvt.s32.f32 %v356
    %v373 = vcvt.s32.f32 %v357
    %v374 = vcvt.s32.f32 %v358
    %v375 = vcvt.s32.f32 %v359
    %v376 = vcvt.s32.f32 %v360
    %v377 = vcvt.s32.f32 %v361
    %v378 = vcvt.s32.f32 %v362
    %v379 = vcvt.s32.f32 %v363
    %v380 = vcvt.s32.f32 %v364
    %v381 = vcvt.s32.f32 %v365
    %v382 = vcvt.s32.f32 %v366
    %v383 = vadd.f32 %v314, %v367
    %v384 = vadd.f32 %v315, %v368
    %v385 = vadd.f32 %v316, %v369
    %v386 = vadd.f32 %v317, %v370
    %v387 = vadd.f32 %v318, %v371
    %v388 = vadd.f32 %v319, %v372
    %v389 = vadd.f32 %v320, %v373
    %v390 = vadd.f32 %v321, %v374
    %v391 = vadd.f32 %v322, %v375
    %v392 = vadd.f32 %v323, %v376
    %v393 = vadd.f32 %v324, %v377
    %v394 = vadd.f32 %v325, %v378
    %v395 = vadd.f32 %v326, %v379
    %v396 = vadd.f32 %v327, %v380
    %v397 = vadd.f32 %v328, %v381
    %v398 = vadd.f32 %v329, %v382
    %v399 = vld [vmem:[%s0 + $0x5] sm:$0x1]
    %v400 = vlaneseq
    %v401 = vshrl.u32 %v400, 7
    %v402 = vsub.s32 0, %v401
    %v403 = vrot.slane %v399, %v402
    %vm404 = vcmp.eq.s32.totalorder %v403, %v38
    %vm405 = vcmp.eq.s32.totalorder %v403, %v39
    %vm406 = vcmp.eq.s32.totalorder %v403, %v40
    %vm407 = vcmp.eq.s32.totalorder %v403, %v41
    %vm408 = vcmp.eq.s32.totalorder %v403, %v42
    %vm409 = vcmp.eq.s32.totalorder %v403, %v43
    %vm410 = vcmp.eq.s32.totalorder %v403, %v44
    %vm411 = vcmp.eq.s32.totalorder %v403, %v45
    %vm412 = vcmp.eq.s32.totalorder %v403, %v46
    %vm413 = vcmp.eq.s32.totalorder %v403, %v47
    %vm414 = vcmp.eq.s32.totalorder %v403, %v48
    %vm415 = vcmp.eq.s32.totalorder %v403, %v49
    %vm416 = vcmp.eq.s32.totalorder %v403, %v50
    %vm417 = vcmp.eq.s32.totalorder %v403, %v51
    %vm418 = vcmp.eq.s32.totalorder %v403, %v52
    %vm419 = vcmp.eq.s32.totalorder %v403, %v53
    %v420 = vsel %vm404, 1, 0
    %v421 = vsel %vm405, 1, 0
    %v422 = vsel %vm406, 1, 0
    %v423 = vsel %vm407, 1, 0
    %v424 = vsel %vm408, 1, 0
    %v425 = vsel %vm409, 1, 0
    %v426 = vsel %vm410, 1, 0
    %v427 = vsel %vm411, 1, 0
    %v428 = vsel %vm412, 1, 0
    %v429 = vsel %vm413, 1, 0
    %v430 = vsel %vm414, 1, 0
    %v431 = vsel %vm415, 1, 0
    %v432 = vsel %vm416, 1, 0
    %v433 = vsel %vm417, 1, 0
    %v434 = vsel %vm418, 1, 0
    %v435 = vsel %vm419, 1, 0
    %v436 = vcvt.s32.f32 %v420
    %v437 = vcvt.s32.f32 %v421
    %v438 = vcvt.s32.f32 %v422
    %v439 = vcvt.s32.f32 %v423
    %v440 = vcvt.s32.f32 %v424
    %v441 = vcvt.s32.f32 %v425
    %v442 = vcvt.s32.f32 %v426
    %v443 = vcvt.s32.f32 %v427
    %v444 = vcvt.s32.f32 %v428
    %v445 = vcvt.s32.f32 %v429
    %v446 = vcvt.s32.f32 %v430
    %v447 = vcvt.s32.f32 %v431
    %v448 = vcvt.s32.f32 %v432
    %v449 = vcvt.s32.f32 %v433
    %v450 = vcvt.s32.f32 %v434
    %v451 = vcvt.s32.f32 %v435
    %v452 = vadd.f32 %v383, %v436
    %v453 = vadd.f32 %v384, %v437
    %v454 = vadd.f32 %v385, %v438
    %v455 = vadd.f32 %v386, %v439
    %v456 = vadd.f32 %v387, %v440
    %v457 = vadd.f32 %v388, %v441
    %v458 = vadd.f32 %v389, %v442
    %v459 = vadd.f32 %v390, %v443
    %v460 = vadd.f32 %v391, %v444
    %v461 = vadd.f32 %v392, %v445
    %v462 = vadd.f32 %v393, %v446
    %v463 = vadd.f32 %v394, %v447
    %v464 = vadd.f32 %v395, %v448
    %v465 = vadd.f32 %v396, %v449
    %v466 = vadd.f32 %v397, %v450
    %v467 = vadd.f32 %v398, %v451
    %v468 = vld [vmem:[%s0 + $0x6] sm:$0x1]
    %v469 = vlaneseq
    %v470 = vshrl.u32 %v469, 7
    %v471 = vsub.s32 0, %v470
    %v472 = vrot.slane %v468, %v471
    %vm473 = vcmp.eq.s32.totalorder %v472, %v38
    %vm474 = vcmp.eq.s32.totalorder %v472, %v39
    %vm475 = vcmp.eq.s32.totalorder %v472, %v40
    %vm476 = vcmp.eq.s32.totalorder %v472, %v41
    %vm477 = vcmp.eq.s32.totalorder %v472, %v42
    %vm478 = vcmp.eq.s32.totalorder %v472, %v43
    %vm479 = vcmp.eq.s32.totalorder %v472, %v44
    %vm480 = vcmp.eq.s32.totalorder %v472, %v45
    %vm481 = vcmp.eq.s32.totalorder %v472, %v46
    %vm482 = vcmp.eq.s32.totalorder %v472, %v47
    %vm483 = vcmp.eq.s32.totalorder %v472, %v48
    %vm484 = vcmp.eq.s32.totalorder %v472, %v49
    %vm485 = vcmp.eq.s32.totalorder %v472, %v50
    %vm486 = vcmp.eq.s32.totalorder %v472, %v51
    %vm487 = vcmp.eq.s32.totalorder %v472, %v52
    %vm488 = vcmp.eq.s32.totalorder %v472, %v53
    %v489 = vsel %vm473, 1, 0
    %v490 = vsel %vm474, 1, 0
    %v491 = vsel %vm475, 1, 0
    %v492 = vsel %vm476, 1, 0
    %v493 = vsel %vm477, 1, 0
    %v494 = vsel %vm478, 1, 0
    %v495 = vsel %vm479, 1, 0
    %v496 = vsel %vm480, 1, 0
    %v497 = vsel %vm481, 1, 0
    %v498 = vsel %vm482, 1, 0
    %v499 = vsel %vm483, 1, 0
    %v500 = vsel %vm484, 1, 0
    %v501 = vsel %vm485, 1, 0
    %v502 = vsel %vm486, 1, 0
    %v503 = vsel %vm487, 1, 0
    %v504 = vsel %vm488, 1, 0
    %v505 = vcvt.s32.f32 %v489
    %v506 = vcvt.s32.f32 %v490
    %v507 = vcvt.s32.f32 %v491
    %v508 = vcvt.s32.f32 %v492
    %v509 = vcvt.s32.f32 %v493
    %v510 = vcvt.s32.f32 %v494
    %v511 = vcvt.s32.f32 %v495
    %v512 = vcvt.s32.f32 %v496
    %v513 = vcvt.s32.f32 %v497
    %v514 = vcvt.s32.f32 %v498
    %v515 = vcvt.s32.f32 %v499
    %v516 = vcvt.s32.f32 %v500
    %v517 = vcvt.s32.f32 %v501
    %v518 = vcvt.s32.f32 %v502
    %v519 = vcvt.s32.f32 %v503
    %v520 = vcvt.s32.f32 %v504
    %v521 = vadd.f32 %v452, %v505
    %v522 = vadd.f32 %v453, %v506
    %v523 = vadd.f32 %v454, %v507
    %v524 = vadd.f32 %v455, %v508
    %v525 = vadd.f32 %v456, %v509
    %v526 = vadd.f32 %v457, %v510
    %v527 = vadd.f32 %v458, %v511
    %v528 = vadd.f32 %v459, %v512
    %v529 = vadd.f32 %v460, %v513
    %v530 = vadd.f32 %v461, %v514
    %v531 = vadd.f32 %v462, %v515
    %v532 = vadd.f32 %v463, %v516
    %v533 = vadd.f32 %v464, %v517
    %v534 = vadd.f32 %v465, %v518
    %v535 = vadd.f32 %v466, %v519
    %v536 = vadd.f32 %v467, %v520
    %v537 = vld [vmem:[%s0 + $0x7] sm:$0x1]
    %v538 = vlaneseq
    %v539 = vshrl.u32 %v538, 7
    %v540 = vsub.s32 0, %v539
    %v541 = vrot.slane %v537, %v540
    %vm542 = vcmp.eq.s32.totalorder %v541, %v38
    %vm543 = vcmp.eq.s32.totalorder %v541, %v39
    %vm544 = vcmp.eq.s32.totalorder %v541, %v40
    %vm545 = vcmp.eq.s32.totalorder %v541, %v41
    %vm546 = vcmp.eq.s32.totalorder %v541, %v42
    %vm547 = vcmp.eq.s32.totalorder %v541, %v43
    %vm548 = vcmp.eq.s32.totalorder %v541, %v44
    %vm549 = vcmp.eq.s32.totalorder %v541, %v45
    %vm550 = vcmp.eq.s32.totalorder %v541, %v46
    %vm551 = vcmp.eq.s32.totalorder %v541, %v47
    %vm552 = vcmp.eq.s32.totalorder %v541, %v48
    %vm553 = vcmp.eq.s32.totalorder %v541, %v49
    %vm554 = vcmp.eq.s32.totalorder %v541, %v50
    %vm555 = vcmp.eq.s32.totalorder %v541, %v51
    %vm556 = vcmp.eq.s32.totalorder %v541, %v52
    %vm557 = vcmp.eq.s32.totalorder %v541, %v53
    %v558 = vsel %vm542, 1, 0
    %v559 = vsel %vm543, 1, 0
    %v560 = vsel %vm544, 1, 0
    %v561 = vsel %vm545, 1, 0
    %v562 = vsel %vm546, 1, 0
    %v563 = vsel %vm547, 1, 0
    %v564 = vsel %vm548, 1, 0
    %v565 = vsel %vm549, 1, 0
    %v566 = vsel %vm550, 1, 0
    %v567 = vsel %vm551, 1, 0
    %v568 = vsel %vm552, 1, 0
    %v569 = vsel %vm553, 1, 0
    %v570 = vsel %vm554, 1, 0
    %v571 = vsel %vm555, 1, 0
    %v572 = vsel %vm556, 1, 0
    %v573 = vsel %vm557, 1, 0
    %v574 = vcvt.s32.f32 %v558
    %v575 = vcvt.s32.f32 %v559
    %v576 = vcvt.s32.f32 %v560
    %v577 = vcvt.s32.f32 %v561
    %v578 = vcvt.s32.f32 %v562
    %v579 = vcvt.s32.f32 %v563
    %v580 = vcvt.s32.f32 %v564
    %v581 = vcvt.s32.f32 %v565
    %v582 = vcvt.s32.f32 %v566
    %v583 = vcvt.s32.f32 %v567
    %v584 = vcvt.s32.f32 %v568
    %v585 = vcvt.s32.f32 %v569
    %v586 = vcvt.s32.f32 %v570
    %v587 = vcvt.s32.f32 %v571
    %v588 = vcvt.s32.f32 %v572
    %v589 = vcvt.s32.f32 %v573
    %v590 = vadd.f32 %v521, %v574
    %v591 = vadd.f32 %v522, %v575
    %v592 = vadd.f32 %v523, %v576
    %v593 = vadd.f32 %v524, %v577
    %v594 = vadd.f32 %v525, %v578
    %v595 = vadd.f32 %v526, %v579
    %v596 = vadd.f32 %v527, %v580
    %v597 = vadd.f32 %v528, %v581
    %v598 = vadd.f32 %v529, %v582
    %v599 = vadd.f32 %v530, %v583
    %v600 = vadd.f32 %v531, %v584
    %v601 = vadd.f32 %v532, %v585
    %v602 = vadd.f32 %v533, %v586
    %v603 = vadd.f32 %v534, %v587
    %v604 = vadd.f32 %v535, %v588
    %v605 = vadd.f32 %v536, %v589
    %v606 = vld [vmem:[%s1] sm:$0xff]
    %v607 = vld [vmem:[%s1 + $0x8] sm:$0xff]
    %v608 = vld [vmem:[%s1 + $0x10] sm:$0xff]
    %v609 = vld [vmem:[%s1 + $0x18] sm:$0xff]
    %v610 = vld [vmem:[%s1 + $0x20] sm:$0xff]
    %v611 = vld [vmem:[%s1 + $0x28] sm:$0xff]
    %v612 = vld [vmem:[%s1 + $0x30] sm:$0xff]
    %v613 = vld [vmem:[%s1 + $0x38] sm:$0xff]
    %v614 = vld [vmem:[%s1 + $0x40] sm:$0xff]
    %v615 = vld [vmem:[%s1 + $0x48] sm:$0xff]
    %v616 = vld [vmem:[%s1 + $0x50] sm:$0xff]
    %v617 = vld [vmem:[%s1 + $0x58] sm:$0xff]
    %v618 = vld [vmem:[%s1 + $0x60] sm:$0xff]
    %v619 = vld [vmem:[%s1 + $0x68] sm:$0xff]
    %v620 = vld [vmem:[%s1 + $0x70] sm:$0xff]
    %v621 = vld [vmem:[%s1 + $0x78] sm:$0xff]
    %v622 = vmul.f32 %v590, 0.125
    %v623 = vmul.f32 %v591, 0.125
    %v624 = vmul.f32 %v592, 0.125
    %v625 = vmul.f32 %v593, 0.125
    %v626 = vmul.f32 %v594, 0.125
    %v627 = vmul.f32 %v595, 0.125
    %v628 = vmul.f32 %v596, 0.125
    %v629 = vmul.f32 %v597, 0.125
    %v630 = vmul.f32 %v598, 0.125
    %v631 = vmul.f32 %v599, 0.125
    %v632 = vmul.f32 %v600, 0.125
    %v633 = vmul.f32 %v601, 0.125
    %v634 = vmul.f32 %v602, 0.125
    %v635 = vmul.f32 %v603, 0.125
    %v636 = vmul.f32 %v604, 0.125
    %v637 = vmul.f32 %v605, 0.125
    %638 = vmatprep.subr.mxu0 0.0
    %639 = vmatpush1.msra.mxu0 %v622
    %640 = vmatprep.subr.mxu0 0.0
    %641 = vmatpush1.msra.mxu0 %v623
    %642 = vmatprep.subr.mxu0 0.0
    %643 = vmatpush1.msra.mxu0 %v624
    %644 = vmatprep.subr.mxu0 0.0
    %645 = vmatpush1.msra.mxu0 %v625
    %646 = vmatprep.subr.mxu0 0.0
    %647 = vmatpush1.msra.mxu0 %v626
    %648 = vmatprep.subr.mxu0 0.0
    %649 = vmatpush1.msra.mxu0 %v627
    %650 = vmatprep.subr.mxu0 0.0
    %651 = vmatpush1.msra.mxu0 %v628
    %652 = vmatprep.subr.mxu0 0.0
    %653 = vmatpush1.msra.mxu0 %v629
    %654 = vmatprep.subr.mxu0 0.0
    %655 = vmatpush1.msra.mxu0 %v630
    %656 = vmatprep.subr.mxu0 0.0
    %657 = vmatpush1.msra.mxu0 %v631
    %658 = vmatprep.subr.mxu0 0.0
    %659 = vmatpush1.msra.mxu0 %v632
    %660 = vmatprep.subr.mxu0 0.0
    %661 = vmatpush1.msra.mxu0 %v633
    %662 = vmatprep.subr.mxu0 0.0
    %663 = vmatpush1.msra.mxu0 %v634
    %664 = vmatprep.subr.mxu0 0.0
    %665 = vmatpush1.msra.mxu0 %v635
    %666 = vmatprep.subr.mxu0 0.0
    %667 = vmatpush1.msra.mxu0 %v636
    %668 = vmatprep.subr.mxu0 0.0
    %669 = vmatpush1.msra.mxu0 %v637
    %670 = vmatprep.subr.mxu0 0.0
    %671 = vmatpush1.msra.mxu0 0.0
    %672 = vmatprep.subr.mxu0 0.0
    %673 = vmatpush1.msra.mxu0 0.0
    %674 = vmatprep.subr.mxu0 0.0
    %675 = vmatpush1.msra.mxu0 0.0
    %676 = vmatprep.subr.mxu0 0.0
    %677 = vmatpush1.msra.mxu0 0.0
    %678 = vmatprep.subr.mxu0 0.0
    %679 = vmatpush1.msra.mxu0 0.0
    %680 = vmatprep.subr.mxu0 0.0
    %681 = vmatpush1.msra.mxu0 0.0
    %682 = vmatprep.subr.mxu0 0.0
    %683 = vmatpush1.msra.mxu0 0.0
    %684 = vmatprep.subr.mxu0 0.0
    %685 = vmatpush1.msra.mxu0 0.0
    %686 = vmatprep.subr.mxu0 0.0
    %687 = vmatpush1.msra.mxu0 0.0
    %688 = vmatprep.subr.mxu0 0.0
    %689 = vmatpush1.msra.mxu0 0.0
    %690 = vmatprep.subr.mxu0 0.0
    %691 = vmatpush1.msra.mxu0 0.0
    %692 = vmatprep.subr.mxu0 0.0
    %693 = vmatpush1.msra.mxu0 0.0
    %694 = vmatprep.subr.mxu0 0.0
    %695 = vmatpush1.msra.mxu0 0.0
    %696 = vmatprep.subr.mxu0 0.0
    %697 = vmatpush1.msra.mxu0 0.0
    %698 = vmatprep.subr.mxu0 0.0
    %699 = vmatpush1.msra.mxu0 0.0
    %700 = vmatprep.subr.mxu0 0.0
    %701 = vmatpush1.msra.mxu0 0.0
    %702 = vmatprep.mubr.f32.mxu0 0.0
    %703 = vmatmul.mubr.f32.gmra.mrb[0].mxu0 %v606
    %v704 = vpop.f32.mrb[0].mxu0
    %v705 = vadd.f32 0.0, %v704
    %v706 = vpop.f32.mrb[0].mxu0
    %707 = vmatprep.mubr.f32.mxu0 0.0
    %708 = vmatmul.mubr.f32.gmra.mrb[0].mxu0 %v607
    %v709 = vpop.f32.mrb[0].mxu0
    %v710 = vadd.f32 0.0, %v709
    %v711 = vpop.f32.mrb[0].mxu0
    %712 = vmatprep.mubr.f32.mxu0 0.0
    %713 = vmatmul.mubr.f32.gmra.mrb[0].mxu0 %v608
    %v714 = vpop.f32.mrb[0].mxu0
    %v715 = vadd.f32 0.0, %v714
    %v716 = vpop.f32.mrb[0].mxu0
    %717 = vmatprep.mubr.f32.mxu0 0.0
    %718 = vmatmul.mubr.f32.gmra.mrb[0].mxu0 %v609
    %v719 = vpop.f32.mrb[0].mxu0
    %v720 = vadd.f32 0.0, %v719
    %v721 = vpop.f32.mrb[0].mxu0
    %722 = vmatprep.mubr.f32.mxu0 0.0
    %723 = vmatmul.mubr.f32.gmra.mrb[0].mxu0 %v610
    %v724 = vpop.f32.mrb[0].mxu0
    %v725 = vadd.f32 0.0, %v724
    %v726 = vpop.f32.mrb[0].mxu0
    %727 = vmatprep.mubr.f32.mxu0 0.0
    %728 = vmatmul.mubr.f32.gmra.mrb[0].mxu0 %v611
    %v729 = vpop.f32.mrb[0].mxu0
    %v730 = vadd.f32 0.0, %v729
    %v731 = vpop.f32.mrb[0].mxu0
    %732 = vmatprep.mubr.f32.mxu0 0.0
    %733 = vmatmul.mubr.f32.gmra.mrb[0].mxu0 %v612
    %v734 = vpop.f32.mrb[0].mxu0
    %v735 = vadd.f32 0.0, %v734
    %v736 = vpop.f32.mrb[0].mxu0
    %737 = vmatprep.mubr.f32.mxu0 0.0
    %738 = vmatmul.mubr.f32.gmra.mrb[0].mxu0 %v613
    %v739 = vpop.f32.mrb[0].mxu0
    %v740 = vadd.f32 0.0, %v739
    %v741 = vpop.f32.mrb[0].mxu0
    %742 = vmatprep.mubr.f32.mxu0 0.0
    %743 = vmatmul.mubr.f32.gmra.mrb[0].mxu0 %v614
    %v744 = vpop.f32.mrb[0].mxu0
    %v745 = vadd.f32 0.0, %v744
    %v746 = vpop.f32.mrb[0].mxu0
    %747 = vmatprep.mubr.f32.mxu0 0.0
    %748 = vmatmul.mubr.f32.gmra.mrb[0].mxu0 %v615
    %v749 = vpop.f32.mrb[0].mxu0
    %v750 = vadd.f32 0.0, %v749
    %v751 = vpop.f32.mrb[0].mxu0
    %752 = vmatprep.mubr.f32.mxu0 0.0
    %753 = vmatmul.mubr.f32.gmra.mrb[0].mxu0 %v616
    %v754 = vpop.f32.mrb[0].mxu0
    %v755 = vadd.f32 0.0, %v754
    %v756 = vpop.f32.mrb[0].mxu0
    %757 = vmatprep.mubr.f32.mxu0 0.0
    %758 = vmatmul.mubr.f32.gmra.mrb[0].mxu0 %v617
    %v759 = vpop.f32.mrb[0].mxu0
    %v760 = vadd.f32 0.0, %v759
    %v761 = vpop.f32.mrb[0].mxu0
    %762 = vmatprep.mubr.f32.mxu0 0.0
    %763 = vmatmul.mubr.f32.gmra.mrb[0].mxu0 %v618
    %v764 = vpop.f32.mrb[0].mxu0
    %v765 = vadd.f32 0.0, %v764
    %v766 = vpop.f32.mrb[0].mxu0
    %767 = vmatprep.mubr.f32.mxu0 0.0
    %768 = vmatmul.mubr.f32.gmra.mrb[0].mxu0 %v619
    %v769 = vpop.f32.mrb[0].mxu0
    %v770 = vadd.f32 0.0, %v769
    %v771 = vpop.f32.mrb[0].mxu0
    %772 = vmatprep.mubr.f32.mxu0 0.0
    %773 = vmatmul.mubr.f32.gmra.mrb[0].mxu0 %v620
    %v774 = vpop.f32.mrb[0].mxu0
    %v775 = vadd.f32 0.0, %v774
    %v776 = vpop.f32.mrb[0].mxu0
    %777 = vmatprep.mubr.f32.mxu0 0.0
    %778 = vmatmul.mubr.f32.gmra.mrb[0].mxu0 %v621
    %v779 = vpop.f32.mrb[0].mxu0
    %v780 = vadd.f32 0.0, %v779
    %v781 = vpop.f32.mrb[0].mxu0
    %782 = vdwg.mxu0
    %v783 = vld [vmem:[#allocation2] sm:$0xff]
    %v784 = vld [vmem:[#allocation2 + $0x8] sm:$0xff]
    %v785 = vld [vmem:[#allocation2 + $0x10] sm:$0xff]
    %v786 = vld [vmem:[#allocation2 + $0x18] sm:$0xff]
    %v787 = vld [vmem:[#allocation2 + $0x20] sm:$0xff]
    %v788 = vld [vmem:[#allocation2 + $0x28] sm:$0xff]
    %v789 = vld [vmem:[#allocation2 + $0x30] sm:$0xff]
    %v790 = vld [vmem:[#allocation2 + $0x38] sm:$0xff]
    %v791 = vld [vmem:[#allocation2 + $0x40] sm:$0xff]
    %v792 = vld [vmem:[#allocation2 + $0x48] sm:$0xff]
    %v793 = vld [vmem:[#allocation2 + $0x50] sm:$0xff]
    %v794 = vld [vmem:[#allocation2 + $0x58] sm:$0xff]
    %v795 = vld [vmem:[#allocation2 + $0x60] sm:$0xff]
    %v796 = vld [vmem:[#allocation2 + $0x68] sm:$0xff]
    %v797 = vld [vmem:[#allocation2 + $0x70] sm:$0xff]
    %v798 = vld [vmem:[#allocation2 + $0x78] sm:$0xff]
    %v799 = vld [vmem:[%s3] sm:$0xff]
    %v800 = vld [vmem:[%s3 + $0x8] sm:$0xff]
    %v801 = vld [vmem:[%s3 + $0x10] sm:$0xff]
    %v802 = vld [vmem:[%s3 + $0x18] sm:$0xff]
    %v803 = vld [vmem:[%s3 + $0x20] sm:$0xff]
    %v804 = vld [vmem:[%s3 + $0x28] sm:$0xff]
    %v805 = vld [vmem:[%s3 + $0x30] sm:$0xff]
    %v806 = vld [vmem:[%s3 + $0x38] sm:$0xff]
    %v807 = vld [vmem:[%s3 + $0x40] sm:$0xff]
    %v808 = vld [vmem:[%s3 + $0x48] sm:$0xff]
    %v809 = vld [vmem:[%s3 + $0x50] sm:$0xff]
    %v810 = vld [vmem:[%s3 + $0x58] sm:$0xff]
    %v811 = vld [vmem:[%s3 + $0x60] sm:$0xff]
    %v812 = vld [vmem:[%s3 + $0x68] sm:$0xff]
    %v813 = vld [vmem:[%s3 + $0x70] sm:$0xff]
    %v814 = vld [vmem:[%s3 + $0x78] sm:$0xff]
    %816 = vset.pattern.permute.xlu0 0
    %817 = vperm.xlu0 %816, %v799
    %v818 = vpop.permute.xlu0 %817
    %821 = vset.pattern.permute.xlu0 0
    %822 = vperm.xlu0 %821, %v800
    %v823 = vpop.permute.xlu0 %822
    %826 = vset.pattern.permute.xlu0 0
    %827 = vperm.xlu0 %826, %v801
    %v828 = vpop.permute.xlu0 %827
    %831 = vset.pattern.permute.xlu0 0
    %832 = vperm.xlu0 %831, %v802
    %v833 = vpop.permute.xlu0 %832
    %836 = vset.pattern.permute.xlu0 0
    %837 = vperm.xlu0 %836, %v803
    %v838 = vpop.permute.xlu0 %837
    %841 = vset.pattern.permute.xlu0 0
    %842 = vperm.xlu0 %841, %v804
    %v843 = vpop.permute.xlu0 %842
    %846 = vset.pattern.permute.xlu0 0
    %847 = vperm.xlu0 %846, %v805
    %v848 = vpop.permute.xlu0 %847
    %851 = vset.pattern.permute.xlu0 0
    %852 = vperm.xlu0 %851, %v806
    %v853 = vpop.permute.xlu0 %852
    %856 = vset.pattern.permute.xlu0 0
    %857 = vperm.xlu0 %856, %v807
    %v858 = vpop.permute.xlu0 %857
    %861 = vset.pattern.permute.xlu0 0
    %862 = vperm.xlu0 %861, %v808
    %v863 = vpop.permute.xlu0 %862
    %866 = vset.pattern.permute.xlu0 0
    %867 = vperm.xlu0 %866, %v809
    %v868 = vpop.permute.xlu0 %867
    %871 = vset.pattern.permute.xlu0 0
    %872 = vperm.xlu0 %871, %v810
    %v873 = vpop.permute.xlu0 %872
    %876 = vset.pattern.permute.xlu0 0
    %877 = vperm.xlu0 %876, %v811
    %v878 = vpop.permute.xlu0 %877
    %881 = vset.pattern.permute.xlu0 0
    %882 = vperm.xlu0 %881, %v812
    %v883 = vpop.permute.xlu0 %882
    %886 = vset.pattern.permute.xlu0 0
    %887 = vperm.xlu0 %886, %v813
    %v888 = vpop.permute.xlu0 %887
    %891 = vset.pattern.permute.xlu0 0
    %892 = vperm.xlu0 %891, %v814
    %v893 = vpop.permute.xlu0 %892
    %895 = vmatprep.subr.mxu0 0.0
    %896 = vmatpush1.msra.mxu0 %v705
    %897 = vmatprep.subr.mxu0 0.0
    %898 = vmatpush1.msra.mxu0 %v710
    %899 = vmatprep.subr.mxu0 0.0
    %900 = vmatpush1.msra.mxu0 %v715
    %901 = vmatprep.subr.mxu0 0.0
    %902 = vmatpush1.msra.mxu0 %v720
    %903 = vmatprep.subr.mxu0 0.0
    %904 = vmatpush1.msra.mxu0 %v725
    %905 = vmatprep.subr.mxu0 0.0
    %906 = vmatpush1.msra.mxu0 %v730
    %907 = vmatprep.subr.mxu0 0.0
    %908 = vmatpush1.msra.mxu0 %v735
    %909 = vmatprep.subr.mxu0 0.0
    %910 = vmatpush1.msra.mxu0 %v740
    %911 = vmatprep.subr.mxu0 0.0
    %912 = vmatpush1.msra.mxu0 %v745
    %913 = vmatprep.subr.mxu0 0.0
    %914 = vmatpush1.msra.mxu0 %v750
    %915 = vmatprep.subr.mxu0 0.0
    %916 = vmatpush1.msra.mxu0 %v755
    %917 = vmatprep.subr.mxu0 0.0
    %918 = vmatpush1.msra.mxu0 %v760
    %919 = vmatprep.subr.mxu0 0.0
    %920 = vmatpush1.msra.mxu0 %v765
    %921 = vmatprep.subr.mxu0 0.0
    %922 = vmatpush1.msra.mxu0 %v770
    %923 = vmatprep.subr.mxu0 0.0
    %924 = vmatpush1.msra.mxu0 %v775
    %925 = vmatprep.subr.mxu0 0.0
    %926 = vmatpush1.msra.mxu0 %v780
    %927 = vmatprep.subr.mxu0 0.0
    %928 = vmatpush1.msra.mxu0 0.0
    %929 = vmatprep.subr.mxu0 0.0
    %930 = vmatpush1.msra.mxu0 0.0
    %931 = vmatprep.subr.mxu0 0.0
    %932 = vmatpush1.msra.mxu0 0.0
    %933 = vmatprep.subr.mxu0 0.0
    %934 = vmatpush1.msra.mxu0 0.0
    %935 = vmatprep.subr.mxu0 0.0
    %936 = vmatpush1.msra.mxu0 0.0
    %937 = vmatprep.subr.mxu0 0.0
    %938 = vmatpush1.msra.mxu0 0.0
    %939 = vmatprep.subr.mxu0 0.0
    %940 = vmatpush1.msra.mxu0 0.0
    %941 = vmatprep.subr.mxu0 0.0
    %942 = vmatpush1.msra.mxu0 0.0
    %943 = vmatprep.subr.mxu0 0.0
    %944 = vmatpush1.msra.mxu0 0.0
    %945 = vmatprep.subr.mxu0 0.0
    %946 = vmatpush1.msra.mxu0 0.0
    %947 = vmatprep.subr.mxu0 0.0
    %948 = vmatpush1.msra.mxu0 0.0
    %949 = vmatprep.subr.mxu0 0.0
    %950 = vmatpush1.msra.mxu0 0.0
    %951 = vmatprep.subr.mxu0 0.0
    %952 = vmatpush1.msra.mxu0 0.0
    %953 = vmatprep.subr.mxu0 0.0
    %954 = vmatpush1.msra.mxu0 0.0
    %955 = vmatprep.subr.mxu0 0.0
    %956 = vmatpush1.msra.mxu0 0.0
    %957 = vmatprep.subr.mxu0 0.0
    %958 = vmatpush1.msra.mxu0 0.0
    %959 = vmatprep.mubr.f32.mxu0 0.0
    %960 = vmatmul.mubr.f32.gmra.mrb[0].mxu0 %v783
    %v961 = vpop.f32.mrb[0].mxu0
    %v962 = vadd.f32 %v818, %v961
    %v963 = vpop.f32.mrb[0].mxu0
    %964 = vmatprep.mubr.f32.mxu0 0.0
    %965 = vmatmul.mubr.f32.gmra.mrb[0].mxu0 %v784
    %v966 = vpop.f32.mrb[0].mxu0
    %v967 = vadd.f32 %v823, %v966
    %v968 = vpop.f32.mrb[0].mxu0
    %969 = vmatprep.mubr.f32.mxu0 0.0
    %970 = vmatmul.mubr.f32.gmra.mrb[0].mxu0 %v785
    %v971 = vpop.f32.mrb[0].mxu0
    %v972 = vadd.f32 %v828, %v971
    %v973 = vpop.f32.mrb[0].mxu0
    %974 = vmatprep.mubr.f32.mxu0 0.0
    %975 = vmatmul.mubr.f32.gmra.mrb[0].mxu0 %v786
    %v976 = vpop.f32.mrb[0].mxu0
    %v977 = vadd.f32 %v833, %v976
    %v978 = vpop.f32.mrb[0].mxu0
    %979 = vmatprep.mubr.f32.mxu0 0.0
    %980 = vmatmul.mubr.f32.gmra.mrb[0].mxu0 %v787
    %v981 = vpop.f32.mrb[0].mxu0
    %v982 = vadd.f32 %v838, %v981
    %v983 = vpop.f32.mrb[0].mxu0
    %984 = vmatprep.mubr.f32.mxu0 0.0
    %985 = vmatmul.mubr.f32.gmra.mrb[0].mxu0 %v788
    %v986 = vpop.f32.mrb[0].mxu0
    %v987 = vadd.f32 %v843, %v986
    %v988 = vpop.f32.mrb[0].mxu0
    %989 = vmatprep.mubr.f32.mxu0 0.0
    %990 = vmatmul.mubr.f32.gmra.mrb[0].mxu0 %v789
    %v991 = vpop.f32.mrb[0].mxu0
    %v992 = vadd.f32 %v848, %v991
    %v993 = vpop.f32.mrb[0].mxu0
    %994 = vmatprep.mubr.f32.mxu0 0.0
    %995 = vmatmul.mubr.f32.gmra.mrb[0].mxu0 %v790
    %v996 = vpop.f32.mrb[0].mxu0
    %v997 = vadd.f32 %v853, %v996
    %v998 = vpop.f32.mrb[0].mxu0
    %999 = vmatprep.mubr.f32.mxu0 0.0
    %1000 = vmatmul.mubr.f32.gmra.mrb[0].mxu0 %v791
    %v1001 = vpop.f32.mrb[0].mxu0
    %v1002 = vadd.f32 %v858, %v1001
    %v1003 = vpop.f32.mrb[0].mxu0
    %1004 = vmatprep.mubr.f32.mxu0 0.0
    %1005 = vmatmul.mubr.f32.gmra.mrb[0].mxu0 %v792
    %v1006 = vpop.f32.mrb[0].mxu0
    %v1007 = vadd.f32 %v863, %v1006
    %v1008 = vpop.f32.mrb[0].mxu0
    %1009 = vmatprep.mubr.f32.mxu0 0.0
    %1010 = vmatmul.mubr.f32.gmra.mrb[0].mxu0 %v793
    %v1011 = vpop.f32.mrb[0].mxu0
    %v1012 = vadd.f32 %v868, %v1011
    %v1013 = vpop.f32.mrb[0].mxu0
    %1014 = vmatprep.mubr.f32.mxu0 0.0
    %1015 = vmatmul.mubr.f32.gmra.mrb[0].mxu0 %v794
    %v1016 = vpop.f32.mrb[0].mxu0
    %v1017 = vadd.f32 %v873, %v1016
    %v1018 = vpop.f32.mrb[0].mxu0
    %1019 = vmatprep.mubr.f32.mxu0 0.0
    %1020 = vmatmul.mubr.f32.gmra.mrb[0].mxu0 %v795
    %v1021 = vpop.f32.mrb[0].mxu0
    %v1022 = vadd.f32 %v878, %v1021
    %v1023 = vpop.f32.mrb[0].mxu0
    %1024 = vmatprep.mubr.f32.mxu0 0.0
    %1025 = vmatmul.mubr.f32.gmra.mrb[0].mxu0 %v796
    %v1026 = vpop.f32.mrb[0].mxu0
    %v1027 = vadd.f32 %v883, %v1026
    %v1028 = vpop.f32.mrb[0].mxu0
    %1029 = vmatprep.mubr.f32.mxu0 0.0
    %1030 = vmatmul.mubr.f32.gmra.mrb[0].mxu0 %v797
    %v1031 = vpop.f32.mrb[0].mxu0
    %v1032 = vadd.f32 %v888, %v1031
    %v1033 = vpop.f32.mrb[0].mxu0
    %1034 = vmatprep.mubr.f32.mxu0 0.0
    %1035 = vmatmul.mubr.f32.gmra.mrb[0].mxu0 %v798
    %v1036 = vpop.f32.mrb[0].mxu0
    %v1037 = vadd.f32 %v893, %v1036
    %v1038 = vpop.f32.mrb[0].mxu0
    %1039 = vdwg.mxu0
    %v1040 = vmax.f32 %v962, 0.0
    %v1041 = vmax.f32 %v967, 0.0
    %v1042 = vmax.f32 %v972, 0.0
    %v1043 = vmax.f32 %v977, 0.0
    %v1044 = vmax.f32 %v982, 0.0
    %v1045 = vmax.f32 %v987, 0.0
    %v1046 = vmax.f32 %v992, 0.0
    %v1047 = vmax.f32 %v997, 0.0
    %v1048 = vmax.f32 %v1002, 0.0
    %v1049 = vmax.f32 %v1007, 0.0
    %v1050 = vmax.f32 %v1012, 0.0
    %v1051 = vmax.f32 %v1017, 0.0
    %v1052 = vmax.f32 %v1022, 0.0
    %v1053 = vmax.f32 %v1027, 0.0
    %v1054 = vmax.f32 %v1032, 0.0
    %v1055 = vmax.f32 %v1037, 0.0
    %v1056 = vld [vmem:[%s4] sm:$0xff]
    %v1057 = vld [vmem:[%s5] sm:$0xff]
    %1059 = vset.pattern.permute.xlu0 0
    %1060 = vperm.xlu0 %1059, %v1057
    %v1061 = vpop.permute.xlu0 %1060
    %1063 = vmatprep.subr.mxu0 0.0
    %1064 = vmatpush1.msra.mxu0 %v1040
    %1065 = vmatprep.subr.mxu0 0.0
    %1066 = vmatpush1.msra.mxu0 %v1041
    %1067 = vmatprep.subr.mxu0 0.0
    %1068 = vmatpush1.msra.mxu0 %v1042
    %1069 = vmatprep.subr.mxu0 0.0
    %1070 = vmatpush1.msra.mxu0 %v1043
    %1071 = vmatprep.subr.mxu0 0.0
    %1072 = vmatpush1.msra.mxu0 %v1044
    %1073 = vmatprep.subr.mxu0 0.0
    %1074 = vmatpush1.msra.mxu0 %v1045
    %1075 = vmatprep.subr.mxu0 0.0
    %1076 = vmatpush1.msra.mxu0 %v1046
    %1077 = vmatprep.subr.mxu0 0.0
    %1078 = vmatpush1.msra.mxu0 %v1047
    %1079 = vmatprep.subr.mxu0 0.0
    %1080 = vmatpush1.msra.mxu0 %v1048
    %1081 = vmatprep.subr.mxu0 0.0
    %1082 = vmatpush1.msra.mxu0 %v1049
    %1083 = vmatprep.subr.mxu0 0.0
    %1084 = vmatpush1.msra.mxu0 %v1050
    %1085 = vmatprep.subr.mxu0 0.0
    %1086 = vmatpush1.msra.mxu0 %v1051
    %1087 = vmatprep.subr.mxu0 0.0
    %1088 = vmatpush1.msra.mxu0 %v1052
    %1089 = vmatprep.subr.mxu0 0.0
    %1090 = vmatpush1.msra.mxu0 %v1053
    %1091 = vmatprep.subr.mxu0 0.0
    %1092 = vmatpush1.msra.mxu0 %v1054
    %1093 = vmatprep.subr.mxu0 0.0
    %1094 = vmatpush1.msra.mxu0 %v1055
    %1095 = vmatprep.subr.mxu0 0.0
    %1096 = vmatpush1.msra.mxu0 0.0
    %1097 = vmatprep.subr.mxu0 0.0
    %1098 = vmatpush1.msra.mxu0 0.0
    %1099 = vmatprep.subr.mxu0 0.0
    %1100 = vmatpush1.msra.mxu0 0.0
    %1101 = vmatprep.subr.mxu0 0.0
    %1102 = vmatpush1.msra.mxu0 0.0
    %1103 = vmatprep.subr.mxu0 0.0
    %1104 = vmatpush1.msra.mxu0 0.0
    %1105 = vmatprep.subr.mxu0 0.0
    %1106 = vmatpush1.msra.mxu0 0.0
    %1107 = vmatprep.subr.mxu0 0.0
    %1108 = vmatpush1.msra.mxu0 0.0
    %1109 = vmatprep.subr.mxu0 0.0
    %1110 = vmatpush1.msra.mxu0 0.0
    %1111 = vmatprep.subr.mxu0 0.0
    %1112 = vmatpush1.msra.mxu0 0.0
    %1113 = vmatprep.subr.mxu0 0.0
    %1114 = vmatpush1.msra.mxu0 0.0
    %1115 = vmatprep.subr.mxu0 0.0
    %1116 = vmatpush1.msra.mxu0 0.0
    %1117 = vmatprep.subr.mxu0 0.0
    %1118 = vmatpush1.msra.mxu0 0.0
    %1119 = vmatprep.subr.mxu0 0.0
    %1120 = vmatpush1.msra.mxu0 0.0
    %1121 = vmatprep.subr.mxu0 0.0
    %1122 = vmatpush1.msra.mxu0 0.0
    %1123 = vmatprep.subr.mxu0 0.0
    %1124 = vmatpush1.msra.mxu0 0.0
    %1125 = vmatprep.subr.mxu0 0.0
    %1126 = vmatpush1.msra.mxu0 0.0
    %1127 = vmatprep.mubr.f32.mxu0 0.0
    %1128 = vmatmul.mubr.f32.gmra.mrb[0].mxu0 %v1056
    %v1129 = vpop.f32.mrb[0].mxu0
    %v1130 = vadd.f32 %v1061, %v1129
    %v1131 = vpop.f32.mrb[0].mxu0
    %1132 = vdwg.mxu0
    %vm1133 = vcmask 15360
    %1134 = vst.msk [vmem:[%s6] sm:$0xff] %vm1133, %v1130
    // Predicated region
    $region30: #{tpu_custom_call.1} parent=1 // pred_check
      _
    $region31: #{tpu_custom_call.1} parent=1 // pred_check_branch
      %1136 = sbr.rel (0) target = $region33
    $region32: #{tpu_custom_call.1} parent=1 // pred_region
      _
    $region33: #{tpu_custom_call.1} parent=1 // pred_fallthru
      _
    // Predicated region
    $region34: #{tpu_custom_call.1} parent=1 // pred_check
      _
    $region35: #{tpu_custom_call.1} parent=1 // pred_check_branch
      %1138 = sbr.rel (0) target = $region37
    $region36: #{tpu_custom_call.1} parent=1 // pred_region
      _
    $region37: #{tpu_custom_call.1} parent=1 // pred_fallthru
      _
    %1139 = vsyncpa [#allocation3], 1

</llo_original>
